<compile_context>
chip_gen: v6e
topology: v6e:2x2x1
jax: 0.10.0
libtpu: 0.0.40
codegen_flags: <defaults>
</compile_context>

<pallas_src>
import numpy as np
import jax
import jax.numpy as jnp
from jax.experimental import pallas as pl
from jax.experimental.pallas import tpu as pltpu

OUT_LANES = 128                      # lane-dense output slab; caller keeps column 0
VMEM_LIMIT = 32 * 1024 * 1024        # explicit scoped-VMEM budget (raises v5e's 16 MiB default)


def _l2_normalize(x, eps=1e-12):
    # torch.nn.functional.normalize(x, dim=-1): x / max(||x||_2, eps), via rsqrt (EUP)
    ss = jnp.sum(x * x, axis=-1, keepdims=True)
    return x * jax.lax.rsqrt(jnp.maximum(ss, eps * eps))


# ---------------------------------------------------------------------------
# Prologue: grid-invariant hy branch, run once for the whole batch.
# ---------------------------------------------------------------------------
def hy_kernel(t_ref, e_ref, lm_ref, emb_ref, hy_ref):
    B = t_ref.shape[0]
    M = lm_ref.shape[1]

    t = t_ref[...]                    # (B, 1)
    e = e_ref[...]                    # (B, 1)
    lm = lm_ref[...]                  # (1, M) sorted time landmarks
    emb = emb_ref[...]                # (M, M)

    # torch.searchsorted(lm, t, side='left') == #landmarks strictly < t
    cnt = jnp.sum((lm < t).astype(jnp.int32), axis=1, keepdims=True)    # (B, 1)
    indx = jnp.where(cnt == 0, 1, cnt)
    indx = jnp.where(indx == M, M - 1, indx)

    k = jax.lax.broadcasted_iota(jnp.int32, (B, M), 1)
    onehot_i = (k == indx).astype(jnp.float32)                          # (B, M)
    onehot_im1 = (k == (indx - 1)).astype(jnp.float32)                  # (B, M)

    lm_i = jnp.sum(onehot_i * lm, axis=1, keepdims=True)
    lm_im1 = jnp.sum(onehot_im1 * lm, axis=1, keepdims=True)
    s = (t - lm_im1) / (lm_i - lm_im1)                                  # (B, 1)

    # Event branch: weights over emb ROWS (emb_im1 + s*(emb_i - emb_im1))
    w_ev = onehot_im1 * (1.0 - s) + onehot_i * s                        # (B, M)
    # Censor branch: uniform mass over the tail, applied to emb COLUMNS (censor @ emb.T).
    # Exact reciprocal (one-shot prologue): no bias for fractional e.
    w_cens = (k >= indx).astype(jnp.float32) / (M - indx).astype(jnp.float32)

    hy_ev = jax.lax.dot_general(w_ev, emb, (((1,), (0,)), ((), ())),
                                preferred_element_type=jnp.float32)     # (B, M)
    hy_cens = jax.lax.dot_general(w_cens, emb, (((1,), (1,)), ((), ())),
                                  preferred_element_type=jnp.float32)   # (B, M)

    hy_raw = hy_ev * e + hy_cens * (1.0 - e)
    hy_ref[...] = _l2_normalize(hy_raw)                                 # (B, M)


# ---------------------------------------------------------------------------
# Main kernel: enc MLP + similarity + cross-entropy per batch row block.
# ---------------------------------------------------------------------------
def fdv_cl_kernel(z_ref, hy_ref, hyblk_ref, w1_ref, b1_ref, w2_ref, b2_ref,
                  logtau_ref, out_ref):
    B = hy_ref.shape[0]               # full batch (sim columns need all rows)

    # tau = sqrt(exp(log_tau))  =>  1/tau^2 = exp(-log_tau); folded ONCE into hz (tb,M)
    inv_tau_sq = jnp.exp(-logtau_ref[...])                              # (1, 1)

    # ---- enc MLP (Linear -> ReLU -> Linear) for this row block ----
    z = z_ref[...]                                                       # (tb, M)
    h = jnp.maximum(
        jnp.dot(z, w1_ref[...], preferred_element_type=jnp.float32) + b1_ref[...],
        0.0)
    enc = jnp.dot(h.astype(w2_ref.dtype), w2_ref[...],
                  preferred_element_type=jnp.float32) + b2_ref[...]
    hz = _l2_normalize(enc) * inv_tau_sq                                 # (tb, M), f32

    hy = hy_ref[...]                                                     # (B, M), pre-normalized
    hy_blk = hyblk_ref[...].astype(jnp.float32)                          # (tb, M) row block

    # sim = (hz/tau) @ (hy/tau).T  ==  (hz * 1/tau^2) @ hy.T
    sim = jax.lax.dot_general(hz.astype(hy.dtype), hy, (((1,), (1,)), ((), ())),
                              preferred_element_type=jnp.float32)        # (tb, B)

    # Diagonal without iota/eye/where over (tb, B): one tb x M elementwise pass.
    g = jnp.sum(hz * hy_blk, axis=1, keepdims=True)                      # (tb, 1)

    mx = jnp.max(sim, axis=1, keepdims=True)
    # TODO(synk): for very large B, tile this logsumexp over B-column chunks
    # (online max/sum) and use a bf16 exp on v6e/v7x when the EUP slot binds.
    lse = mx + jnp.log(jnp.sum(jnp.exp(sim - mx), axis=1, keepdims=True))
    dummy_ce = (lse - g) - jnp.log(jnp.float32(B))

    # output = dummy_ce + exp(slogits - slogits) - 1 == dummy_ce for the forward value.
    # TODO(synk): a custom_vjp backward must recompute the off-diagonal logsumexp residual.
    out = jnp.clip(dummy_ce, -5.0, 15.0)                                 # (tb, 1)
    out_ref[...] = jnp.broadcast_to(out, out_ref.shape)                  # lane-dense store


def _pick_row_block(B):
    # Keep the sublane dim a multiple of 8 (or == B); prefer >= 2 grid steps
    # when B allows so both v7x TensorCores get a row block under "parallel".
    target = B // 2 if B >= 16 else B
    for cand in (256, 128, 64, 32, 16, 8):
        if cand <= target and B % cand == 0:
            return cand
    return B


def fdv_cl_forward(z, t, e, time_landmark, time_emb, w1, b1, w2, b2, log_tau,
                   compute_dtype=jnp.float32):
    # TODO(synk): for production shapes keep M, H (and B) multiples of 128 (pad
    # if needed) so the MXU / vreg lanes are fully occupied.
    B, M = z.shape
    H = w1.shape[1]
    tb = _pick_row_block(B)
    nsteps = B // tb

    t2 = jnp.asarray(t).reshape(B, 1).astype(jnp.float32)
    e2 = jnp.asarray(e).reshape(B, 1).astype(jnp.float32)
    lm2 = jnp.asarray(time_landmark).reshape(1, M).astype(jnp.float32)
    emb = jnp.asarray(time_emb).astype(jnp.float32)

    # ---- one-shot prologue: hoisted, grid-invariant hy branch ----
    hy = pl.pallas_call(
        hy_kernel,
        out_shape=jax.ShapeDtypeStruct((B, M), jnp.float32),
        grid=(1,),
        in_specs=[
            pl.BlockSpec((B, 1), lambda i: (0, 0)),     # t
            pl.BlockSpec((B, 1), lambda i: (0, 0)),     # e
            pl.BlockSpec((1, M), lambda i: (0, 0)),     # time landmarks
            pl.BlockSpec((M, M), lambda i: (0, 0)),     # time_emb_landmark
        ],
        out_specs=pl.BlockSpec((B, M), lambda i: (0, 0)),
        compiler_params=pltpu.CompilerParams(
            dimension_semantics=("arbitrary",),
            vmem_limit_bytes=VMEM_LIMIT),
        cost_estimate=pl.CostEstimate(
            flops=int(4 * B * M * M),
            transcendentals=int(B),
            bytes_accessed=int(4 * (2 * B + M + M * M + B * M))),
    )(t2, e2, lm2, emb)

    # MXU operands may be narrowed (bf16 on v6e/v7x); f32 accumulation is kept.
    z_c = jnp.asarray(z).astype(compute_dtype)
    hy_c = hy.astype(compute_dtype)
    w1_c = jnp.asarray(w1).astype(compute_dtype)
    w2_c = jnp.asarray(w2).astype(compute_dtype)
    b1_f = jnp.asarray(b1).reshape(1, -1).astype(jnp.float32)
    b2_f = jnp.asarray(b2).reshape(1, -1).astype(jnp.float32)
    logtau2 = jnp.asarray(log_tau).reshape(1, 1).astype(jnp.float32)

    esize = jnp.dtype(compute_dtype).itemsize
    flops = int(4 * B * M * H + 2 * B * B * M)
    transcendentals = int(B * B + 3 * B)
    bytes_accessed = int(
        esize * (B * M + nsteps * B * M + B * M + nsteps * (M * H + H * M))
        + 4 * (H + 2 * M + 1 + B * OUT_LANES))

    # TODO(synk): for large M/H, single-buffer the grid-invariant inputs
    # (hy, W1, W2) via pipeline_mode=pl.Buffered(1) to halve their VMEM under
    # v7x's 64 MiB budget.
    out_wide = pl.pallas_call(
        fdv_cl_kernel,
        out_shape=jax.ShapeDtypeStruct((B, OUT_LANES), jnp.float32),
        grid=(nsteps,),
        in_specs=[
            pl.BlockSpec((tb, M), lambda i: (i, 0)),        # z row block
            pl.BlockSpec((B, M), lambda i: (0, 0)),         # hy (full, grid-invariant)
            pl.BlockSpec((tb, M), lambda i: (i, 0)),        # hy row block (diagonal)
            pl.BlockSpec((M, H), lambda i: (0, 0)),         # W1
            pl.BlockSpec((1, H), lambda i: (0, 0)),         # b1
            pl.BlockSpec((H, M), lambda i: (0, 0)),         # W2
            pl.BlockSpec((1, M), lambda i: (0, 0)),         # b2
            pl.BlockSpec((1, 1), lambda i: (0, 0)),         # log_tau
        ],
        out_specs=pl.BlockSpec((tb, OUT_LANES), lambda i: (i, 0)),
        compiler_params=pltpu.CompilerParams(
            dimension_semantics=("parallel",),
            vmem_limit_bytes=VMEM_LIMIT),
        cost_estimate=pl.CostEstimate(
            flops=flops, transcendentals=transcendentals,
            bytes_accessed=bytes_accessed),
    )(z_c, hy_c, hy_c, w1_c, b1_f, w2_c, b2_f, logtau2)

    return out_wide[:, :1]


# ---- pure-JAX reference (mirrors the PyTorch forward) ----
def ref_forward(z, t, e, lm, emb, w1, b1, w2, b2, log_tau):
    B, M = z.shape
    tau = jnp.sqrt(jnp.exp(log_tau.reshape(())))

    def normalize(x, eps=1e-12):
        n = jnp.sqrt(jnp.sum(x * x, axis=-1, keepdims=True))
        return x / jnp.maximum(n, eps)

    h = jnp.maximum(z @ w1 + b1.reshape(1, -1), 0.0)
    enc = h @ w2 + b2.reshape(1, -1)
    hz = normalize(enc) / tau

    indx = jnp.searchsorted(lm, t, side='left')
    indx = jnp.where(indx == 0, 1, indx)
    indx = jnp.where(indx == M, M - 1, indx)
    coef = (emb[indx] - emb[indx - 1]) / (lm[indx] - lm[indx - 1])[:, None]
    out_ev = emb[indx - 1] + coef * (t - lm[indx - 1])[:, None]
    ar = jnp.arange(M)[None, :]
    censor_mask = (ar >= indx[:, None]).astype(jnp.float32) / (M - indx)[:, None]
    out_censor = censor_mask @ emb.T
    hy_raw = out_ev * e[:, None] + out_censor * (1.0 - e)[:, None]
    hy = normalize(hy_raw) / tau

    sim = hz @ hy.T
    g = jnp.diag(sim)[:, None]
    ce = jax.nn.logsumexp(sim, axis=1, keepdims=True) - g
    dummy_ce = ce - jnp.log(jnp.float32(B))
    logits = jnp.where(jnp.eye(B, dtype=bool), -jnp.inf, sim - g)
    slogits = jax.nn.logsumexp(logits, axis=1, keepdims=True)
    out = dummy_ce + jnp.exp(slogits - slogits) - 1.0
    return jnp.clip(out, -5.0, 15.0)


if __name__ == "__main__":
    B, M, H = 8, 16, 32   # batch, m (time-landmark / feature dim), hidden dim

    key = jax.random.PRNGKey(0)
    k_z, k_t, k_e, k_tt, k_w1, k_b1, k_w2, k_b2 = jax.random.split(key, 8)

    # deterministic "training time" data -> time landmarks (percentile=False path)
    train_time = jax.random.uniform(k_tt, (100,), minval=0.0, maxval=10.0)
    time_landmark = jnp.linspace(jnp.min(train_time), jnp.max(train_time), M)
    time_emb = jnp.eye(M, dtype=jnp.float32)            # time_emb_landmark init
    log_tau = jnp.array([np.log(1.0)], dtype=jnp.float32)

    # enc MLP parameters (h_dim=[H]): Linear(M,H) -> ReLU -> Linear(H,M)
    w1 = jax.random.normal(k_w1, (M, H), jnp.float32) * 0.1
    b1 = jax.random.normal(k_b1, (H,), jnp.float32) * 0.01
    w2 = jax.random.normal(k_w2, (H, M), jnp.float32) * 0.1
    b2 = jax.random.normal(k_b2, (M,), jnp.float32) * 0.01

    # inputs: covariate embedding z, event/censoring times t, event indicators e
    z = jax.random.normal(k_z, (B, M), jnp.float32)
    t = jax.random.uniform(k_t, (B,), minval=0.5, maxval=9.5)
    e = (jax.random.uniform(k_e, (B,)) > 0.5).astype(jnp.float32)

    out = fdv_cl_forward(z, t, e, time_landmark, time_emb, w1, b1, w2, b2, log_tau)
    out = jax.block_until_ready(out)

    ref = ref_forward(z, t, e, time_landmark, time_emb, w1, b1, w2, b2, log_tau)
    assert out.shape == (B, 1)
    assert np.allclose(np.asarray(out), np.asarray(ref), rtol=1e-4, atol=1e-4), (
        np.max(np.abs(np.asarray(out) - np.asarray(ref))))

    print("KERNEL_OK")
</pallas_src>

<mosaic_0001>
module attributes {stable_mosaic.version = 11 : i64} {
  func.func @hy_kernel(%arg0: i32, %arg1: memref<8x1xf32, #tpu.memory_space<vmem>>, %arg2: memref<8x1xf32, #tpu.memory_space<vmem>>, %arg3: memref<1x16xf32, #tpu.memory_space<vmem>>, %arg4: memref<16x16xf32, #tpu.memory_space<vmem>>, %arg5: memref<8x16xf32, #tpu.memory_space<vmem>>) attributes {dimension_semantics = [#tpu.dimension_semantics<arbitrary>], iteration_bounds = array<i64: 1>, scalar_prefetch = 0 : i64, scratch_operands = 0 : i64, tpu.core_type = #tpu.core_type<tc>, window_params = [{pipeline_mode = #tpu.pipeline_mode<synchronous>, transform_indices = @transform_0, window_bounds = array<i64: 8, 1>}, {pipeline_mode = #tpu.pipeline_mode<synchronous>, transform_indices = @transform_1, window_bounds = array<i64: 8, 1>}, {pipeline_mode = #tpu.pipeline_mode<synchronous>, transform_indices = @transform_2, window_bounds = array<i64: 1, 16>}, {pipeline_mode = #tpu.pipeline_mode<synchronous>, transform_indices = @transform_3, window_bounds = array<i64: 16, 16>}, {pipeline_mode = #tpu.pipeline_mode<synchronous>, transform_indices = @transform_4, window_bounds = array<i64: 8, 16>}]} {
    %c0 = arith.constant 0 : index
    %c0_0 = arith.constant 0 : index
    %0 = vector.load %arg1[%c0, %c0_0] : memref<8x1xf32, #tpu.memory_space<vmem>>, vector<8x1xf32>
    %c0_1 = arith.constant 0 : index
    %c0_2 = arith.constant 0 : index
    %1 = vector.load %arg2[%c0_1, %c0_2] : memref<8x1xf32, #tpu.memory_space<vmem>>, vector<8x1xf32>
    %c0_3 = arith.constant 0 : index
    %c0_4 = arith.constant 0 : index
    %2 = vector.load %arg3[%c0_3, %c0_4] : memref<1x16xf32, #tpu.memory_space<vmem>>, vector<1x16xf32>
    %c0_5 = arith.constant 0 : index
    %c0_6 = arith.constant 0 : index
    %3 = vector.load %arg4[%c0_5, %c0_6] : memref<16x16xf32, #tpu.memory_space<vmem>>, vector<16x16xf32>
    %4 = vector.broadcast %2 : vector<1x16xf32> to vector<8x16xf32>
    %5 = vector.broadcast %0 : vector<8x1xf32> to vector<8x16xf32>
    %6 = arith.cmpf olt, %4, %5 : vector<8x16xf32>
    %7 = arith.extui %6 : vector<8x16xi1> to vector<8x16xi32>
    %cst = arith.constant dense<0> : vector<8xi32>
    %8 = vector.multi_reduction <add>, %7, %cst [1] : vector<8x16xi32> to vector<8xi32>
    %9 = vector.shape_cast %8 : vector<8xi32> to vector<8x1xi32>
    %c0_i32 = arith.constant 0 : i32
    %10 = vector.broadcast %c0_i32 : i32 to vector<8x1xi32>
    %11 = arith.cmpi eq, %9, %10 : vector<8x1xi32>
    %c1_i32 = arith.constant 1 : i32
    %12 = vector.broadcast %c1_i32 : i32 to vector<8x1xi32>
    %13 = arith.select %11, %12, %9 : vector<8x1xi1>, vector<8x1xi32>
    %c16_i32 = arith.constant 16 : i32
    %14 = vector.broadcast %c16_i32 : i32 to vector<8x1xi32>
    %15 = arith.cmpi eq, %13, %14 : vector<8x1xi32>
    %c15_i32 = arith.constant 15 : i32
    %16 = vector.broadcast %c15_i32 : i32 to vector<8x1xi32>
    %17 = arith.select %15, %16, %13 : vector<8x1xi1>, vector<8x1xi32>
    %18 = tpu.iota {dimensions = array<i32: 1>} : vector<8x16xi32>
    %19 = vector.broadcast %17 : vector<8x1xi32> to vector<8x16xi32>
    %20 = arith.cmpi eq, %18, %19 : vector<8x16xi32>
    %21 = arith.extui %20 : vector<8x16xi1> to vector<8x16xi32>
    %22 = arith.sitofp %21 : vector<8x16xi32> to vector<8x16xf32>
    %c1_i32_7 = arith.constant 1 : i32
    %23 = vector.broadcast %c1_i32_7 : i32 to vector<8x1xi32>
    %24 = arith.subi %17, %23 : vector<8x1xi32>
    %25 = vector.broadcast %24 : vector<8x1xi32> to vector<8x16xi32>
    %26 = arith.cmpi eq, %18, %25 : vector<8x16xi32>
    %27 = arith.extui %26 : vector<8x16xi1> to vector<8x16xi32>
    %28 = arith.sitofp %27 : vector<8x16xi32> to vector<8x16xf32>
    %29 = vector.broadcast %2 : vector<1x16xf32> to vector<8x16xf32>
    %30 = arith.mulf %22, %29 : vector<8x16xf32>
    %cst_8 = arith.constant dense<0.000000e+00> : vector<8xf32>
    %31 = vector.multi_reduction <add>, %30, %cst_8 [1] : vector<8x16xf32> to vector<8xf32>
    %32 = vector.shape_cast %31 : vector<8xf32> to vector<8x1xf32>
    %33 = vector.broadcast %2 : vector<1x16xf32> to vector<8x16xf32>
    %34 = arith.mulf %28, %33 : vector<8x16xf32>
    %cst_9 = arith.constant dense<0.000000e+00> : vector<8xf32>
    %35 = vector.multi_reduction <add>, %34, %cst_9 [1] : vector<8x16xf32> to vector<8xf32>
    %36 = vector.shape_cast %35 : vector<8xf32> to vector<8x1xf32>
    %37 = arith.subf %0, %36 : vector<8x1xf32>
    %38 = arith.subf %32, %36 : vector<8x1xf32>
    %39 = arith.divf %37, %38 : vector<8x1xf32>
    %cst_10 = arith.constant 1.000000e+00 : f32
    %40 = vector.broadcast %cst_10 : f32 to vector<8x1xf32>
    %41 = arith.subf %40, %39 : vector<8x1xf32>
    %42 = vector.broadcast %41 : vector<8x1xf32> to vector<8x16xf32>
    %43 = arith.mulf %28, %42 : vector<8x16xf32>
    %44 = vector.broadcast %39 : vector<8x1xf32> to vector<8x16xf32>
    %45 = arith.mulf %22, %44 : vector<8x16xf32>
    %46 = arith.addf %43, %45 : vector<8x16xf32>
    %47 = vector.broadcast %17 : vector<8x1xi32> to vector<8x16xi32>
    %48 = arith.cmpi sge, %18, %47 : vector<8x16xi32>
    %49 = arith.extui %48 : vector<8x16xi1> to vector<8x16xi32>
    %50 = arith.sitofp %49 : vector<8x16xi32> to vector<8x16xf32>
    %c16_i32_11 = arith.constant 16 : i32
    %51 = vector.broadcast %c16_i32_11 : i32 to vector<8x1xi32>
    %52 = arith.subi %51, %17 : vector<8x1xi32>
    %53 = arith.sitofp %52 : vector<8x1xi32> to vector<8x1xf32>
    %54 = vector.broadcast %53 : vector<8x1xf32> to vector<8x16xf32>
    %55 = arith.divf %50, %54 : vector<8x16xf32>
    %cst_12 = arith.constant dense<0.000000e+00> : vector<8x16xf32>
    %56 = tpu.matmul %46, %3, %cst_12 {dimension_numbers = #tpu.dot_dimension_numbers<[1], [0], [0], [1], [0, 0, 1, 1], [], []>} : vector<8x16xf32>, vector<16x16xf32>, vector<8x16xf32> -> vector<8x16xf32>
    %cst_13 = arith.constant dense<0.000000e+00> : vector<8x16xf32>
    %57 = tpu.matmul %55, %3, %cst_13 {dimension_numbers = #tpu.dot_dimension_numbers<[1], [1], [0], [0], [0, 0, 1, 0], [], []>} : vector<8x16xf32>, vector<16x16xf32>, vector<8x16xf32> -> vector<8x16xf32>
    %58 = vector.broadcast %1 : vector<8x1xf32> to vector<8x16xf32>
    %59 = arith.mulf %56, %58 : vector<8x16xf32>
    %cst_14 = arith.constant 1.000000e+00 : f32
    %60 = vector.broadcast %cst_14 : f32 to vector<8x1xf32>
    %61 = arith.subf %60, %1 : vector<8x1xf32>
    %62 = vector.broadcast %61 : vector<8x1xf32> to vector<8x16xf32>
    %63 = arith.mulf %57, %62 : vector<8x16xf32>
    %64 = arith.addf %59, %63 : vector<8x16xf32>
    %65 = arith.mulf %64, %64 : vector<8x16xf32>
    %cst_15 = arith.constant dense<0.000000e+00> : vector<8xf32>
    %66 = vector.multi_reduction <add>, %65, %cst_15 [1] : vector<8x16xf32> to vector<8xf32>
    %67 = vector.shape_cast %66 : vector<8xf32> to vector<8x1xf32>
    %cst_16 = arith.constant 1.000000e-24 : f32
    %68 = vector.broadcast %cst_16 : f32 to vector<8x1xf32>
    %69 = arith.maximumf %67, %68 : vector<8x1xf32>
    %70 = math.rsqrt %69 : vector<8x1xf32>
    %71 = vector.broadcast %70 : vector<8x1xf32> to vector<8x16xf32>
    %72 = arith.mulf %64, %71 : vector<8x16xf32>
    %c0_17 = arith.constant 0 : index
    %c0_18 = arith.constant 0 : index
    %73 = vector.load %arg5[%c0_17, %c0_18] : memref<8x16xf32, #tpu.memory_space<vmem>>, vector<8x16xf32>
    tpu.vector_store %arg5[%c0_17, %c0_18], %72 {strides = array<i32>} : memref<8x16xf32, #tpu.memory_space<vmem>>, vector<8x16xf32>,
    return
  }
  func.func @transform_0(%arg0: i32) -> (i32, i32) {
    %c0_i32 = arith.constant 0 : i32
    %c0_i32_0 = arith.constant 0 : i32
    %c0_i32_1 = arith.constant 0 : i32
    return %c0_i32, %c0_i32_0 : i32, i32
  }
  func.func @transform_1(%arg0: i32) -> (i32, i32) {
    %c0_i32 = arith.constant 0 : i32
    %c0_i32_0 = arith.constant 0 : i32
    %c0_i32_1 = arith.constant 0 : i32
    return %c0_i32, %c0_i32_0 : i32, i32
  }
  func.func @transform_2(%arg0: i32) -> (i32, i32) {
    %c0_i32 = arith.constant 0 : i32
    %c0_i32_0 = arith.constant 0 : i32
    %c0_i32_1 = arith.constant 0 : i32
    return %c0_i32, %c0_i32_0 : i32, i32
  }
  func.func @transform_3(%arg0: i32) -> (i32, i32) {
    %c0_i32 = arith.constant 0 : i32
    %c0_i32_0 = arith.constant 0 : i32
    %c0_i32_1 = arith.constant 0 : i32
    return %c0_i32, %c0_i32_0 : i32, i32
  }
  func.func @transform_4(%arg0: i32) -> (i32, i32) {
    %c0_i32 = arith.constant 0 : i32
    %c0_i32_0 = arith.constant 0 : i32
    %c0_i32_1 = arith.constant 0 : i32
    return %c0_i32, %c0_i32_0 : i32, i32
  }
}

</mosaic_0001>

<llo_original>
// kernel: tpu_custom_call.1
$region0: #{tpu_custom_call.1}
  #allocation0 [shape = 'u32[]', space=smem, size = 0x4, offset = 0x4, fixed_abs, tag = 'smem constant byte address 0x4 - core index']
  #allocation1 [shape = 'u32[144,128]{1,0:T(1,128)}', space=vmem, size = 0x12000, scoped, tag = 'internal scratch']
  %s0 = inlined_call_operand.vmem [shape: f32[8,1], index: 0, kind: input, shape index: {}]
  %s1 = inlined_call_operand.vmem [shape: f32[8,1], index: 1, kind: input, shape index: {}]
  %s2 = inlined_call_operand.vmem [shape: f32[1,16], index: 2, kind: input, shape index: {}]
  %s3 = inlined_call_operand.vmem [shape: f32[16,16], index: 3, kind: input, shape index: {}]
  %s4 = inlined_call_operand.hbm [shape: f32[8,16], index: 4, kind: output, shape index: {}]
  %s5 = sld [smem:[#allocation0]]
  $region26: #{tpu_custom_call.1} parent=0
    _
  %s7 = ssub.s32 1, %s5
  %s8 = scalar_select 0, %s7, %s5
  $region1: #{tpu_custom_call.1} parent=0
    #allocation2 [shape = 'u8[4096]{0}', space=vmem, size = 0x1000, scoped, tag = 'output window, operand 0, single buffered']
    #allocation3 [shape = 's32[1]{0}', space=sflag, size = 0x4, scoped, tag = 'scoped memory for tpu_custom_call.1']
    %9 = vsyncpa [#allocation3], 0
    // Predicated region
    $region2: #{tpu_custom_call.1} parent=1 // pred_check
      _
    $region3: #{tpu_custom_call.1} parent=1 // pred_check_branch
      %11 = sbr.rel (0) target = $region5
    $region4: #{tpu_custom_call.1} parent=1 // pred_region
      _
    $region5: #{tpu_custom_call.1} parent=1 // pred_fallthru
      _
    // Predicated region
    $region6: #{tpu_custom_call.1} parent=1 // pred_check
      _
    $region7: #{tpu_custom_call.1} parent=1 // pred_check_branch
      %13 = sbr.rel (0) target = $region9
    $region8: #{tpu_custom_call.1} parent=1 // pred_region
      _
    $region9: #{tpu_custom_call.1} parent=1 // pred_fallthru
      _
    // Predicated region
    $region10: #{tpu_custom_call.1} parent=1 // pred_check
      _
    $region11: #{tpu_custom_call.1} parent=1 // pred_check_branch
      %15 = sbr.rel (0) target = $region13
    $region12: #{tpu_custom_call.1} parent=1 // pred_region
      _
    $region13: #{tpu_custom_call.1} parent=1 // pred_fallthru
      _
    // Predicated region
    $region14: #{tpu_custom_call.1} parent=1 // pred_check
      _
    $region15: #{tpu_custom_call.1} parent=1 // pred_check_branch
      %17 = sbr.rel (0) target = $region17
    $region16: #{tpu_custom_call.1} parent=1 // pred_region
      _
    $region17: #{tpu_custom_call.1} parent=1 // pred_fallthru
      _
    %v18 = vld [vmem:[%s0] sm:$0xff]
    %v19 = vld [vmem:[%s1] sm:$0xff]
    %v20 = vld [vmem:[%s2] sm:$0x1]
    %v21 = vld [vmem:[%s3] sm:$0xff]
    %v22 = vld [vmem:[%s3 + $0x8] sm:$0xff]
    %v24 = vlaneseq
    %v25 = vshrl.u32 %v24, 7
    %v26 = vsub.s32 0, %v25
    %v27 = vrot.slane %v20, %v26
    %30 = vset.pattern.permute.xlu0 0
    %31 = vperm.xlu0 %30, %v18
    %v32 = vpop.permute.xlu0 %31
    %vm34 = vcmp.lt.f32.partialorder %v27, %v32
    %v35 = vsel %vm34, 1, 0
    %vm36 = vcmask 130048
    %v37 = vsel %vm36, %v35, 0
    %v38 = vand.u32 %v37, 65535
    %v39 = vshrl.u32 %v37, 16
    %v40 = vcvt.s32.f32 %v38
    %v41 = vcvt.s32.f32 %v39
    %42 = vadd.xlane.f32.xlu0 %v40
    %v43 = vpop.xlane.xlu0 %42
    %44 = vadd.xlane.f32.xlu0 %v41
    %v45 = vpop.xlane.xlu0 %44
    %v46 = vcvt.f32.s32 %v43
    %v47 = vcvt.f32.s32 %v45
    %v48 = vshll.u32 %v47, 16
    %v49 = vadd.s32 %v48, %v46
    %vm50 = vcmp.eq.s32.totalorder %v49, 0
    %v51 = vsel %vm50, 1, %v49
    %vm52 = vcmp.eq.s32.totalorder %v51, 16
    %v53 = vsel %vm52, 15, %v51
    %v54 = vlaneseq
    %v55 = vand.u32 %v54, 127
    %vm56 = vcmp.eq.s32.totalorder %v55, %v53
    %v57 = vsel %vm56, 1, 0
    %v58 = vcvt.s32.f32 %v57
    %v59 = vsub.s32 %v53, 1
    %vm60 = vcmp.eq.s32.totalorder %v55, %v59
    %v61 = vsel %vm60, 1, 0
    %v62 = vcvt.s32.f32 %v61
    %v63 = vmul.f32 %v58, %v27
    %v64 = vsel %vm36, %v63, 0.0
    %65 = vadd.xlane.f32.xlu0 %v64
    %v66 = vpop.xlane.xlu0 %65
    %v67 = vmul.f32 %v62, %v27
    %v68 = vsel %vm36, %v67, 0.0
    %69 = vadd.xlane.f32.xlu0 %v68
    %v70 = vpop.xlane.xlu0 %69
    %v71 = vsub.f32 %v18, %v70
    %v72 = vsub.f32 %v66, %v70
    %v73 = vrcp.pop %v72
    %v74 = vmul.f32 %v71, %v73
    %v75 = vsub.f32 1.0, %v74
    %77 = vset.pattern.permute.xlu0 0
    %78 = vperm.xlu0 %77, %v75
    %v79 = vpop.permute.xlu0 %78
    %v81 = vmul.f32 %v62, %v79
    %83 = vset.pattern.permute.xlu0 0
    %84 = vperm.xlu0 %83, %v74
    %v85 = vpop.permute.xlu0 %84
    %v87 = vmul.f32 %v58, %v85
    %v88 = vadd.f32 %v81, %v87
    %vm89 = vcmp.ge.s32.totalorder %v55, %v53
    %v90 = vsel %vm89, 1, 0
    %v91 = vcvt.s32.f32 %v90
    %v92 = vsub.s32 16, %v53
    %v93 = vcvt.s32.f32 %v92
    %v94 = vrcp.pop %v93
    %v95 = vmul.f32 %v91, %v94
    %v97 = vsel %vm36, %v88, 0
    %99 = vmatprep.subr.mxu0 0.0
    %100 = vmatpush1.msra.mxu0 0.0
    %101 = vmatprep.subr.mxu0 0.0
    %102 = vmatpush1.msra.mxu0 0.0
    %103 = vmatprep.subr.mxu0 0.0
    %104 = vmatpush1.msra.mxu0 0.0
    %105 = vmatprep.subr.mxu0 0.0
    %106 = vmatpush1.msra.mxu0 0.0
    %107 = vmatprep.subr.mxu0 0.0
    %108 = vmatpush1.msra.mxu0 0.0
    %109 = vmatprep.subr.mxu0 0.0
    %110 = vmatpush1.msra.mxu0 0.0
    %111 = vmatprep.subr.mxu0 0.0
    %112 = vmatpush1.msra.mxu0 0.0
    %113 = vmatprep.subr.mxu0 0.0
    %114 = vmatpush1.msra.mxu0 0.0
    %115 = vmatprep.subr.mxu0 0.0
    %116 = vmatpush1.msra.mxu0 0.0
    %117 = vmatprep.subr.mxu0 0.0
    %118 = vmatpush1.msra.mxu0 0.0
    %119 = vmatprep.subr.mxu0 0.0
    %120 = vmatpush1.msra.mxu0 0.0
    %121 = vmatprep.subr.mxu0 0.0
    %122 = vmatpush1.msra.mxu0 0.0
    %123 = vmatprep.subr.mxu0 0.0
    %124 = vmatpush1.msra.mxu0 0.0
    %125 = vmatprep.subr.mxu0 0.0
    %126 = vmatpush1.msra.mxu0 0.0
    %127 = vmatprep.subr.mxu0 0.0
    %128 = vmatpush1.msra.mxu0 %v22
    %129 = vmatprep.subr.mxu0 0.0
    %130 = vmatpush1.msra.mxu0 %v21
    %131 = vmatprep.subr.mxu0 0.0
    %132 = vmatpush2.msra.mxu0 0.0
    %133 = vmatprep.subr.mxu0 0.0
    %134 = vmatpush2.msra.mxu0 0.0
    %135 = vmatprep.subr.mxu0 0.0
    %136 = vmatpush2.msra.mxu0 0.0
    %137 = vmatprep.subr.mxu0 0.0
    %138 = vmatpush2.msra.mxu0 0.0
    %139 = vmatprep.subr.mxu0 0.0
    %140 = vmatpush2.msra.mxu0 0.0
    %141 = vmatprep.subr.mxu0 0.0
    %142 = vmatpush2.msra.mxu0 0.0
    %143 = vmatprep.subr.mxu0 0.0
    %144 = vmatpush2.msra.mxu0 0.0
    %145 = vmatprep.subr.mxu0 0.0
    %146 = vmatpush2.msra.mxu0 0.0
    %147 = vmatprep.subr.mxu0 0.0
    %148 = vmatpush2.msra.mxu0 0.0
    %149 = vmatprep.subr.mxu0 0.0
    %150 = vmatpush2.msra.mxu0 0.0
    %151 = vmatprep.subr.mxu0 0.0
    %152 = vmatpush2.msra.mxu0 0.0
    %153 = vmatprep.subr.mxu0 0.0
    %154 = vmatpush2.msra.mxu0 0.0
    %155 = vmatprep.subr.mxu0 0.0
    %156 = vmatpush2.msra.mxu0 0.0
    %157 = vmatprep.subr.mxu0 0.0
    %158 = vmatpush2.msra.mxu0 0.0
    %159 = vmatprep.subr.mxu0 0.0
    %160 = vmatpush2.msra.mxu0 0.0
    %161 = vmatprep.subr.mxu0 0.0
    %162 = vmatpush2.msra.mxu0 0.0
    %163 = vmatprep.mubr.f32.mxu0 0.0
    %164 = vmatmul.mubr.f32.gmra.mxu0 %v97
    %v165 = vpop.f32.mrf.mxu0
    %v166 = vadd.f32 0.0, %v165
    %v167 = vpop.f32.mrf.mxu0
    %168 = vdwg.mxu0
    %v170 = vsel %vm36, %v95, 0
    %v173 = vsel %vm36, %v21, 0
    %v176 = vsel %vm36, %v22, 0
    %178 = vmatprep.subr.mxu0 0.0
    %179 = vmatpush1.xpose.msra.mxu0 0.0
    %180 = vmatprep.subr.mxu0 0.0
    %181 = vmatpush1.xpose.msra.mxu0 0.0
    %182 = vmatprep.subr.mxu0 0.0
    %183 = vmatpush1.xpose.msra.mxu0 0.0
    %184 = vmatprep.subr.mxu0 0.0
    %185 = vmatpush1.xpose.msra.mxu0 0.0
    %186 = vmatprep.subr.mxu0 0.0
    %187 = vmatpush1.xpose.msra.mxu0 0.0
    %188 = vmatprep.subr.mxu0 0.0
    %189 = vmatpush1.xpose.msra.mxu0 0.0
    %190 = vmatprep.subr.mxu0 0.0
    %191 = vmatpush1.xpose.msra.mxu0 0.0
    %192 = vmatprep.subr.mxu0 0.0
    %193 = vmatpush1.xpose.msra.mxu0 0.0
    %194 = vmatprep.subr.mxu0 0.0
    %195 = vmatpush1.xpose.msra.mxu0 0.0
    %196 = vmatprep.subr.mxu0 0.0
    %197 = vmatpush1.xpose.msra.mxu0 0.0
    %198 = vmatprep.subr.mxu0 0.0
    %199 = vmatpush1.xpose.msra.mxu0 0.0
    %200 = vmatprep.subr.mxu0 0.0
    %201 = vmatpush1.xpose.msra.mxu0 0.0
    %202 = vmatprep.subr.mxu0 0.0
    %203 = vmatpush1.xpose.msra.mxu0 0.0
    %204 = vmatprep.subr.mxu0 0.0
    %205 = vmatpush1.xpose.msra.mxu0 0.0
    %206 = vmatprep.subr.mxu0 0.0
    %207 = vmatpush1.xpose.msra.mxu0 %v176
    %208 = vmatprep.subr.mxu0 0.0
    %209 = vmatpush1.xpose.msra.mxu0 %v173
    %210 = vmatprep.subr.mxu0 0.0
    %211 = vmatpush2.xpose.msra.mxu0 0.0
    %212 = vmatprep.subr.mxu0 0.0
    %213 = vmatpush2.xpose.msra.mxu0 0.0
    %214 = vmatprep.subr.mxu0 0.0
    %215 = vmatpush2.xpose.msra.mxu0 0.0
    %216 = vmatprep.subr.mxu0 0.0
    %217 = vmatpush2.xpose.msra.mxu0 0.0
    %218 = vmatprep.subr.mxu0 0.0
    %219 = vmatpush2.xpose.msra.mxu0 0.0
    %220 = vmatprep.subr.mxu0 0.0
    %221 = vmatpush2.xpose.msra.mxu0 0.0
    %222 = vmatprep.subr.mxu0 0.0
    %223 = vmatpush2.xpose.msra.mxu0 0.0
    %224 = vmatprep.subr.mxu0 0.0
    %225 = vmatpush2.xpose.msra.mxu0 0.0
    %226 = vmatprep.subr.mxu0 0.0
    %227 = vmatpush2.xpose.msra.mxu0 0.0
    %228 = vmatprep.subr.mxu0 0.0
    %229 = vmatpush2.xpose.msra.mxu0 0.0
    %230 = vmatprep.subr.mxu0 0.0
    %231 = vmatpush2.xpose.msra.mxu0 0.0
    %232 = vmatprep.subr.mxu0 0.0
    %233 = vmatpush2.xpose.msra.mxu0 0.0
    %234 = vmatprep.subr.mxu0 0.0
    %235 = vmatpush2.xpose.msra.mxu0 0.0
    %236 = vmatprep.subr.mxu0 0.0
    %237 = vmatpush2.xpose.msra.mxu0 0.0
    %238 = vmatprep.subr.mxu0 0.0
    %239 = vmatpush2.xpose.msra.mxu0 0.0
    %240 = vmatprep.subr.mxu0 0.0
    %241 = vmatpush2.xpose.msra.mxu0 0.0
    %242 = vmatprep.mubr.f32.mxu0 0.0
    %243 = vmatmul.mubr.f32.gmra.mxu0 %v170
    %v244 = vpop.f32.mrf.mxu0
    %v245 = vadd.f32 0.0, %v244
    %v246 = vpop.f32.mrf.mxu0
    %247 = vdwg.mxu0
    %249 = vset.pattern.permute.xlu0 0
    %250 = vperm.xlu0 %249, %v19
    %v251 = vpop.permute.xlu0 %250
    %v253 = vmul.f32 %v166, %v251
    %v254 = vsub.f32 1.0, %v19
    %256 = vset.pattern.permute.xlu0 0
    %257 = vperm.xlu0 %256, %v254
    %v258 = vpop.permute.xlu0 %257
    %v260 = vmul.f32 %v245, %v258
    %v261 = vadd.f32 %v253, %v260
    %v262 = vmul.f32 %v261, %v261
    %v263 = vsel %vm36, %v262, 0.0
    %264 = vadd.xlane.f32.xlu0 %v263
    %v265 = vpop.xlane.xlu0 %264
    %v266 = vmax.f32 %v265, 1e-24
    %v267 = vrsqrt.pop %v266
    %v268 = vmul.f32 %v261, %v267
    %269 = vst.msk [vmem:[#allocation2] sm:$0xff] %vm36, %v268
    // Predicated region
    $region18: #{tpu_custom_call.1} parent=1 // pred_check
      _
    $region19: #{tpu_custom_call.1} parent=1 // pred_check_branch
      %271 = sbr.rel (0) target = $region21
    $region20: #{tpu_custom_call.1} parent=1 // pred_region
      %s273 = ssub.s32 128, 128
      %274 = vsyncadd [#allocation3], %s273
      %s276 = sshll.u32 [#allocation2], 4
      %s277 = int_to_ptr.vmem [resolvable:$true] %s276
      %279 = dma.vmem_to_hbm [thread:$0]  %s277, 128, %s4, [#allocation3]
    $region21: #{tpu_custom_call.1} parent=1 // pred_fallthru
      _
    // Predicated region
    $region22: #{tpu_custom_call.1} parent=1 // pred_check
      _
    $region23: #{tpu_custom_call.1} parent=1 // pred_check_branch
      %281 = sbr.rel (0) target = $region25
    $region24: #{tpu_custom_call.1} parent=1 // pred_region
      %282 = dma.done [#allocation3], 128
    $region25: #{tpu_custom_call.1} parent=1 // pred_fallthru
      _
    %283 = vsyncpa [#allocation3], 1

</llo_original>
